<compile_context>
chip_gen: v7x
topology: tpu7x:2x2x1
jax: 0.10.0
libtpu: 0.0.40
codegen_flags: <defaults>
</compile_context>

<pallas_src>
import jax
import jax.numpy as jnp
from jax.experimental import pallas as pl
from jax.experimental.pallas import tpu as pltpu


def _round_up(x, m):
    return (x + m - 1) // m * m


def _vocab_head_kernel(x_ref, wout_ref, out_ref, h_ref):
    # x_ref   : (TM, H)  f32   pre-activation rows (emb + img proj), resident
    #                          across the inner vocab axis (index_map ignores j)
    # wout_ref: (H, TN)  bf16  streamed output-projection tile
    # out_ref : (TM, TN) f32   logits tile (lane-dense, TN % 128 == 0)
    # h_ref   : (TM, H)  bf16  VMEM scratch: tanh applied once per row tile
    @pl.when(pl.program_id(1) == 0)
    def _():
        # Elementwise tanh in f32 (VPU/EUP), cast to bf16 only for the MXU.
        h_ref[...] = jnp.tanh(x_ref[...]).astype(h_ref.dtype)

    out_ref[...] = jnp.dot(
        h_ref[...], wout_ref[...], preferred_element_type=jnp.float32
    ).astype(out_ref.dtype)


def caption_forward(image_features, caption_inputs, params, *, tm=256, tn=512):
    """image_features: [B, D] float32, caption_inputs: [B, T] int32 -> [B, T, V] f32."""
    w_img, embed, w_out = params["w_img"], params["embed"], params["w_out"]
    B, D = image_features.shape
    T = caption_inputs.shape[1]
    H = w_img.shape[1]
    V = w_out.shape[1]
    R = B * T

    # --- XLA glue (cheap / MXU-unfriendly work): image projection, embedding
    # gather, broadcast add.  Only the big (R,H)x(H,V) matmul runs in Pallas.
    proj = jnp.dot(image_features, w_img, preferred_element_type=jnp.float32)  # [B, H]
    tok_emb = jnp.take(embed, caption_inputs, axis=0)                          # [B, T, H]
    x = (tok_emb + proj[:, None, :]).reshape(R, H).astype(jnp.float32)         # [R, H]

    # --- Tile sizing: TM rows (multiple of 8), TN vocab lanes (multiple of 128).
    TM = min(tm, _round_up(R, 8))
    TN = min(tn, _round_up(V, 128))
    Rp = _round_up(R, TM)
    Vp = _round_up(V, TN)

    x_p = jnp.pad(x, ((0, Rp - R), (0, 0)))
    w_out_p = jnp.pad(w_out, ((0, 0), (0, Vp - V))).astype(jnp.bfloat16)

    grid = (Rp // TM, Vp // TN)  # (row tiles [parallel], vocab tiles [arbitrary, inner])

    cost = pl.CostEstimate(
        flops=2 * Rp * H * Vp,
        transcendentals=Rp * H,
        bytes_accessed=Rp * H * 4 + (Rp // TM) * H * Vp * 2 + Rp * Vp * 4,
    )

    logits_p = pl.pallas_call(
        _vocab_head_kernel,
        out_shape=jax.ShapeDtypeStruct((Rp, Vp), jnp.float32),
        grid_spec=pltpu.PrefetchScalarGridSpec(
            num_scalar_prefetch=0,
            grid=grid,
            in_specs=[
                # Activation rows: same block across the inner vocab axis -> resident.
                pl.BlockSpec((TM, H), lambda i, j: (i, 0)),
                # W_out streamed over the vocab axis.
                pl.BlockSpec((H, TN), lambda i, j: (0, j)),
            ],
            out_specs=pl.BlockSpec((TM, TN), lambda i, j: (i, j)),
            scratch_shapes=[pltpu.VMEM((TM, H), jnp.bfloat16)],
        ),
        compiler_params=pltpu.CompilerParams(
            dimension_semantics=("parallel", "arbitrary"),
            # Tile footprint (double-buffered) is a few MiB even at H=1024,
            # TN=512; 48 MiB leaves headroom on v7x's 64 MiB VMEM per core.
            vmem_limit_bytes=48 * 1024 * 1024,
        ),
        cost_estimate=cost,
    )(x_p, w_out_p)

    return logits_p[:R, :V].reshape(B, T, V)


def init_params(key, d_img, hidden, vocab):
    k1, k2, k3 = jax.random.split(key, 3)
    return {
        "w_img": jax.random.normal(k1, (d_img, hidden), jnp.float32) * 0.02,
        "embed": jax.random.normal(k2, (vocab, hidden), jnp.float32) * 0.02,
        "w_out": jax.random.normal(k3, (hidden, vocab), jnp.float32) * 0.02,
    }


if __name__ == "__main__":
    B, D, T, H, V = 2, 32, 8, 32, 32  # batch, image-feat dim, seq, hidden, vocab

    key = jax.random.PRNGKey(0)
    k_img, k_tok, k_par = jax.random.split(key, 3)

    image_features = jax.random.normal(k_img, (B, D), jnp.float32)
    caption_inputs = jax.random.randint(k_tok, (B, T), 0, V, jnp.int32)
    params = init_params(k_par, D, H, V)

    logits = caption_forward(image_features, caption_inputs, params)
    logits = jax.block_until_ready(logits)

    # Pure-JAX reference matching the kernel's precision path
    # (f32 tanh/add, bf16 matmul operands, f32 accumulation).
    proj_ref = image_features @ params["w_img"]
    emb_ref = jnp.take(params["embed"], caption_inputs, axis=0)
    h_ref = jnp.tanh(emb_ref + proj_ref[:, None, :])
    ref = jnp.dot(
        h_ref.reshape(-1, H).astype(jnp.bfloat16),
        params["w_out"].astype(jnp.bfloat16),
        preferred_element_type=jnp.float32,
    ).reshape(B, T, V)

    assert logits.shape == (B, T, V)
    assert jnp.allclose(logits, ref, atol=2e-3, rtol=1e-2)

    print("KERNEL_OK")
</pallas_src>

<mosaic_0001>
module attributes {stable_mosaic.version = 11 : i64} {
  func.func @_vocab_head_kernel(%arg0: i32, %arg1: i32, %arg2: memref<16x32xf32, #tpu.memory_space<vmem>>, %arg3: memref<32x128xbf16, #tpu.memory_space<vmem>>, %arg4: memref<16x128xf32, #tpu.memory_space<vmem>>, %arg5: memref<16x32xbf16, #tpu.memory_space<vmem>>) attributes {dimension_semantics = [#tpu.dimension_semantics<parallel>, #tpu.dimension_semantics<arbitrary>], iteration_bounds = array<i64: 1, 1>, scalar_prefetch = 0 : i64, scratch_operands = 1 : i64, tpu.core_type = #tpu.core_type<tc>, window_params = [{transform_indices = @transform_0, window_bounds = array<i64: 16, 32>}, {transform_indices = @transform_1, window_bounds = array<i64: 32, 128>}, {transform_indices = @transform_2, window_bounds = array<i64: 16, 128>}]} {
    %c0_i32 = arith.constant 0 : i32
    %0 = arith.cmpi eq, %arg1, %c0_i32 : i32
    %1 = arith.extui %0 : i1 to i32
    %c0_i32_0 = arith.constant 0 : i32
    %2 = arith.cmpi ne, %1, %c0_i32_0 : i32
    scf.if %2 {
      %c0_6 = arith.constant 0 : index
      %c0_7 = arith.constant 0 : index
      %7 = vector.load %arg2[%c0_6, %c0_7] : memref<16x32xf32, #tpu.memory_space<vmem>>, vector<16x32xf32>
      %8 = math.tanh %7 : vector<16x32xf32>
      %9 = arith.truncf %8 : vector<16x32xf32> to vector<16x32xbf16>
      %c0_8 = arith.constant 0 : index
      %c0_9 = arith.constant 0 : index
      %10 = vector.load %arg5[%c0_8, %c0_9] : memref<16x32xbf16, #tpu.memory_space<vmem>>, vector<16x32xbf16>
      tpu.vector_store %arg5[%c0_8, %c0_9], %9 {strides = array<i32>} : memref<16x32xbf16, #tpu.memory_space<vmem>>, vector<16x32xbf16>,
    } else {
    }
    %c0 = arith.constant 0 : index
    %c0_1 = arith.constant 0 : index
    %3 = vector.load %arg5[%c0, %c0_1] : memref<16x32xbf16, #tpu.memory_space<vmem>>, vector<16x32xbf16>
    %c0_2 = arith.constant 0 : index
    %c0_3 = arith.constant 0 : index
    %4 = vector.load %arg3[%c0_2, %c0_3] : memref<32x128xbf16, #tpu.memory_space<vmem>>, vector<32x128xbf16>
    %cst = arith.constant dense<0.000000e+00> : vector<16x128xf32>
    %5 = tpu.matmul %3, %4, %cst {dimension_numbers = #tpu.dot_dimension_numbers<[1], [0], [0], [1], [0, 0, 1, 1], [], []>} : vector<16x32xbf16>, vector<32x128xbf16>, vector<16x128xf32> -> vector<16x128xf32>
    %c0_4 = arith.constant 0 : index
    %c0_5 = arith.constant 0 : index
    %6 = vector.load %arg4[%c0_4, %c0_5] : memref<16x128xf32, #tpu.memory_space<vmem>>, vector<16x128xf32>
    tpu.vector_store %arg4[%c0_4, %c0_5], %5 {strides = array<i32>} : memref<16x128xf32, #tpu.memory_space<vmem>>, vector<16x128xf32>,
    return
  }
  func.func @transform_0(%arg0: i32, %arg1: i32) -> (i32, i32) {
    %c0_i32 = arith.constant 0 : i32
    %c0_i32_0 = arith.constant 0 : i32
    return %arg0, %c0_i32 : i32, i32
  }
  func.func @transform_1(%arg0: i32, %arg1: i32) -> (i32, i32) {
    %c0_i32 = arith.constant 0 : i32
    %c0_i32_0 = arith.constant 0 : i32
    return %c0_i32, %arg1 : i32, i32
  }
  func.func @transform_2(%arg0: i32, %arg1: i32) -> (i32, i32) {
    %c0_i32 = arith.constant 0 : i32
    return %arg0, %arg1 : i32, i32
  }
}

</mosaic_0001>

<llo_original>
// kernel: tpu_custom_call.1
$region0: #{tpu_custom_call.1}
  #allocation0 [shape = 'u32[]', space=smem, size = 0x4, offset = 0x4, fixed_abs, tag = 'smem constant byte address 0x4 - core index']
  #allocation1 [shape = 'u32[144,128]{1,0:T(1,128)}', space=vmem, size = 0x12000, scoped, tag = 'internal scratch']
  #allocation2 [shape = 'bf16[16,32]{1,0:T(16,128)(2,1)}', space=vmem, size = 0x1000, scoped, tag = 'scratch operand']
  %s0 = inlined_call_operand.hbm [shape: f32[16,32], index: 0, kind: input, shape index: {}]
  %s1 = inlined_call_operand.hbm [shape: bf16[32,128], index: 1, kind: input, shape index: {}]
  %s2 = inlined_call_operand.hbm [shape: f32[16,128], index: 2, kind: output, shape index: {}]
  %s3 = sld [smem:[#allocation0]]
  $region30: #{tpu_custom_call.1} parent=0
    _
  %s5 = ssub.s32 1, %s3
  %s6 = scalar_select 0, %s5, %s3
  $region1: #{tpu_custom_call.1} parent=0
    #allocation3 [shape = 'u8[8192]{0}', space=vmem, size = 0x2000, scoped, tag = 'input window, operand 0, single buffered']
    #allocation4 [shape = 's32[1]{0}', space=sflag, size = 0x4, scoped, tag = 'scoped memory for tpu_custom_call.1']
    #allocation5 [shape = 's32[1]{0}', space=sflag, size = 0x4, scoped, tag = 'scoped memory for tpu_custom_call.1']
    #allocation6 [shape = 'u8[8192]{0}', space=vmem, size = 0x2000, scoped, tag = 'input window, operand 1, single buffered']
    #allocation7 [shape = 's32[1]{0}', space=sflag, size = 0x4, scoped, tag = 'scoped memory for tpu_custom_call.1']
    #allocation8 [shape = 'u8[8192]{0}', space=vmem, size = 0x2000, scoped, tag = 'output window, operand 0, single buffered']
    %7 = vsyncpa [#allocation4], 0
    %8 = vsyncpa [#allocation7], 0
    %9 = vsyncpa [#allocation5], 0
    // Predicated region
    $region2: #{tpu_custom_call.1} parent=1 // pred_check
      _
    $region3: #{tpu_custom_call.1} parent=1 // pred_check_branch
      %11 = sbr.rel (0) target = $region5
    $region4: #{tpu_custom_call.1} parent=1 // pred_region
      %s13 = ssub.s32 256, 256
      %14 = vsyncadd [#allocation4], %s13
      %s15 = sshll.u32 [#allocation3], 4
      %s16 = int_to_ptr.vmem [resolvable:$true] %s15
      %21 = dma.hbm_to_vmem [thread:$0]  %s0, 256, %s16, [#allocation4], 128, 128, 8
    $region5: #{tpu_custom_call.1} parent=1 // pred_fallthru
      _
    // Predicated region
    $region6: #{tpu_custom_call.1} parent=1 // pred_check
      _
    $region7: #{tpu_custom_call.1} parent=1 // pred_check_branch
      %23 = sbr.rel (0) target = $region9
    $region8: #{tpu_custom_call.1} parent=1 // pred_region
      %s25 = ssub.s32 256, 256
      %26 = vsyncadd [#allocation7], %s25
      %s27 = sshll.u32 [#allocation6], 4
      %s28 = int_to_ptr.vmem [resolvable:$true] %s27
      %33 = dma.hbm_to_vmem [thread:$0]  %s1, 256, %s28, [#allocation7], 64, 64, 4
    $region9: #{tpu_custom_call.1} parent=1 // pred_fallthru
      _
    // Predicated region
    $region10: #{tpu_custom_call.1} parent=1 // pred_check
      _
    $region11: #{tpu_custom_call.1} parent=1 // pred_check_branch
      %35 = sbr.rel (0) target = $region13
    $region12: #{tpu_custom_call.1} parent=1 // pred_region
      %36 = dma.done [#allocation4], 256
    $region13: #{tpu_custom_call.1} parent=1 // pred_fallthru
      _
    // Predicated region
    $region14: #{tpu_custom_call.1} parent=1 // pred_check
      _
    $region15: #{tpu_custom_call.1} parent=1 // pred_check_branch
      %38 = sbr.rel (0) target = $region17
    $region16: #{tpu_custom_call.1} parent=1 // pred_region
      %39 = dma.done [#allocation7], 256
    $region17: #{tpu_custom_call.1} parent=1 // pred_fallthru
      _
    %p41 = scmp.eq.s32.totalorder 0, 0
    // Predicated region
    $region18: #{tpu_custom_call.1} parent=1 // pred_check
      %p42 = pneg %p41
    $region19: #{tpu_custom_call.1} parent=1 // pred_check_branch
      %44 = sbr.rel (%p42) target = $region21
    $region20: #{tpu_custom_call.1} parent=1 // pred_region
      %v45 = vld [vmem:[#allocation3] sm:$0xff]
      %v46 = vld [vmem:[#allocation3 + $0x8] sm:$0xff]
      %v47 = vtanh.pop %v45
      %v48 = vtanh.pop %v46
      %v49 = vpack.c.bf16 %v48, %v47
      %vm50 = vcmask 261120
      %51 = vst.msk [vmem:[#allocation2] sm:$0xff] %vm50, %v49
    $region21: #{tpu_custom_call.1} parent=1 // pred_fallthru
      _
    %v52 = vld [vmem:[#allocation2] sm:$0xff]
    %v53 = vld [vmem:[#allocation6] sm:$0xf]
    %v54 = vld [vmem:[#allocation6 + $0x4] sm:$0xf]
    %v55 = vld [vmem:[#allocation6 + $0x8] sm:$0xf]
    %v56 = vld [vmem:[#allocation6 + $0xc] sm:$0xf]
    %v61 = vunpack.c.l.b16 %v53
    %v62 = vunpack.c.l.b16 %v54
    %v63 = vunpack.c.l.b16 %v55
    %v64 = vunpack.c.l.b16 %v56
    %v65 = vpack.c.b16 %v62, %v61
    %v66 = vpack.c.b16 %v64, %v63
    %vm69 = vcmask 261120
    %v71 = vsel %vm69, %v52, 0
    %73 = vmatprep.subr.bf16.mxu0 0
    %74 = vmatpush1.bf16.msra.mxu0 %v65
    %75 = vmatprep.subr.bf16.mxu0 0
    %76 = vmatpush1.bf16.msra.mxu0 %v66
    %77 = vmatprep.subr.bf16.mxu0 0
    %78 = vmatpush1.bf16.msra.mxu0 0
    %79 = vmatprep.subr.bf16.mxu0 0
    %80 = vmatpush1.bf16.msra.mxu0 0
    %81 = vmatprep.subr.bf16.mxu0 0
    %82 = vmatpush1.bf16.msra.mxu0 0
    %83 = vmatprep.subr.bf16.mxu0 0
    %84 = vmatpush1.bf16.msra.mxu0 0
    %85 = vmatprep.subr.bf16.mxu0 0
    %86 = vmatpush1.bf16.msra.mxu0 0
    %87 = vmatprep.subr.bf16.mxu0 0
    %88 = vmatpush1.bf16.msra.mxu0 0
    %89 = vmatprep.subr.bf16.mxu0 0
    %90 = vmatpush1.bf16.msra.mxu0 0
    %91 = vmatprep.subr.bf16.mxu0 0
    %92 = vmatpush1.bf16.msra.mxu0 0
    %93 = vmatprep.subr.bf16.mxu0 0
    %94 = vmatpush1.bf16.msra.mxu0 0
    %95 = vmatprep.subr.bf16.mxu0 0
    %96 = vmatpush1.bf16.msra.mxu0 0
    %97 = vmatprep.subr.bf16.mxu0 0
    %98 = vmatpush1.bf16.msra.mxu0 0
    %99 = vmatprep.subr.bf16.mxu0 0
    %100 = vmatpush1.bf16.msra.mxu0 0
    %101 = vmatprep.subr.bf16.mxu0 0
    %102 = vmatpush1.bf16.msra.mxu0 0
    %103 = vmatprep.subr.bf16.mxu0 0
    %104 = vmatpush1.bf16.msra.mxu0 0
    %105 = vmatprep.mubr.bf16.mxu0 0
    %106 = vmatmul.mubr.bf16.gmra.mrb[0].mxu0 %v71
    %v107 = vpop.f32.mrb[0].mxu0
    %v108 = vadd.f32 0.0, %v107
    %v109 = vpop.f32.mrb[0].mxu0
    %v110 = vpop.f32.mrb[0].mxu0
    %v111 = vadd.f32 0.0, %v110
    %v112 = vpop.f32.mrb[0].mxu0
    %113 = vdwg.mxu0
    %114 = vst [vmem:[#allocation8] sm:$0xff] %v108
    %115 = vst [vmem:[#allocation8 + $0x8] sm:$0xff] %v111
    // Predicated region
    $region22: #{tpu_custom_call.1} parent=1 // pred_check
      _
    $region23: #{tpu_custom_call.1} parent=1 // pred_check_branch
      %117 = sbr.rel (0) target = $region25
    $region24: #{tpu_custom_call.1} parent=1 // pred_region
      %s119 = ssub.s32 256, 256
      %120 = vsyncadd [#allocation5], %s119
      %s121 = sshll.u32 [#allocation8], 4
      %s122 = int_to_ptr.vmem [resolvable:$true] %s121
      %127 = dma.vmem_to_hbm [thread:$0]  %s122, 256, %s2, [#allocation5], 128, 128, 8
    $region25: #{tpu_custom_call.1} parent=1 // pred_fallthru
      _
    // Predicated region
    $region26: #{tpu_custom_call.1} parent=1 // pred_check
      _
    $region27: #{tpu_custom_call.1} parent=1 // pred_check_branch
      %129 = sbr.rel (0) target = $region29
    $region28: #{tpu_custom_call.1} parent=1 // pred_region
      %130 = dma.done [#allocation5], 256
    $region29: #{tpu_custom_call.1} parent=1 // pred_fallthru
      _
    %131 = vsyncpa [#allocation4], 1
    %132 = vsyncpa [#allocation7], 1
    %133 = vsyncpa [#allocation5], 1

</llo_original>
